<compile_context>
chip_gen: v7x
topology: tpu7x:2x2x1
jax: 0.10.0
libtpu: 0.0.40
codegen_flags: <defaults>
</compile_context>

<pallas_src>
import functools

import jax
import jax.numpy as jnp
from jax.experimental import pallas as pl
from jax.experimental.pallas import tpu as pltpu

_EPS = 1e-6            # matches torch.nn.functional.pairwise_distance default eps
_LANE = 128
_SUBLANE = 8
_MAX_TILE_B = 1024
# 2 feature inputs x 2 pipeline buffers x (tile_b x D_lane-padded) must fit
# the smallest default scoped VMEM (v5e: 16 MiB) -> conservative 12 MiB budget.
_VMEM_BUDGET_BYTES = 12 * 1024 * 1024


def _round_up(x, m):
    return ((x + m - 1) // m) * m


def _contrastive_kernel(margin_ref, o1_ref, o2_ref, lab_ref, out_ref,
                        *, total_b, tile_b, mask_rows):
    """One batch tile: per-row contrastive loss terms, written to out_ref."""
    margin = margin_ref[0, 0]                                  # SMEM scalar
    o1 = o1_ref[...].astype(jnp.float32)
    o2 = o2_ref[...].astype(jnp.float32)
    diff = o1 - o2 + _EPS                                      # torch pairwise_distance eps

    d2 = jnp.sum(diff * diff, axis=-1, keepdims=True)          # (TB, 1) squared distance
    d = jnp.sqrt(d2)                                           # (TB, 1) euclidean distance
    lab = lab_ref[...]                                         # (TB, 1) float32
    hinge = jnp.maximum(margin - d, 0.0)
    # Keep the blended form (not a where()) so fractional labels behave
    # exactly like the PyTorch module.
    per_row = lab * d2 + (1.0 - lab) * hinge * hinge           # (TB, 1)

    # Ragged last tile: rows past the real batch hold undefined data; zero
    # them (their stores are also dropped by Pallas since they are OOB).
    if mask_rows:
        row = (jax.lax.broadcasted_iota(jnp.int32, per_row.shape, 0)
               + pl.program_id(0) * tile_b)
        per_row = jnp.where(row < total_b, per_row, 0.0)

    out_ref[...] = per_row


def contrastive_loss(output1, output2, label, margin=2.0, *,
                     max_tile_b=_MAX_TILE_B):
    """Pallas TPU implementation of ContrastiveLoss.forward.

    output1, output2: (B, D) float arrays (f32 or bf16)
    label:            (B,) or (B, 1) array (any numeric/bool dtype)
    margin:           python float or traced scalar (SMEM, no recompile)
    returns:          scalar f32 loss
    """
    B, D = output1.shape
    itemsize = jnp.dtype(output1.dtype).itemsize

    # Tile-size derivation only: the compiler pads lanes to 128 in VMEM.
    d_lanes = _round_up(D, _LANE)
    tile_cap = _VMEM_BUDGET_BYTES // max(1, 4 * d_lanes * itemsize)
    tile_b = max(_SUBLANE, min(max_tile_b, (tile_cap // _SUBLANE) * _SUBLANE))
    if tile_b >= B:
        tile_b = B                        # single tile, full batch extent
    num_tiles = pl.cdiv(B, tile_b)
    mask_rows = (B % tile_b) != 0

    lab = jnp.reshape(label, (B, 1)).astype(jnp.float32)
    margin_arr = jnp.full((1, 1), margin, dtype=jnp.float32)

    kernel = functools.partial(
        _contrastive_kernel, total_b=B, tile_b=tile_b, mask_rows=mask_rows)

    per_row = pl.pallas_call(
        kernel,
        out_shape=jax.ShapeDtypeStruct((B, 1), jnp.float32),
        grid=(num_tiles,),
        in_specs=[
            pl.BlockSpec(memory_space=pltpu.MemorySpace.SMEM),     # margin scalar
            pl.BlockSpec((tile_b, D), lambda i: (i, 0)),           # output1 tile
            pl.BlockSpec((tile_b, D), lambda i: (i, 0)),           # output2 tile
            pl.BlockSpec((tile_b, 1), lambda i: (i, 0)),           # label tile
        ],
        out_specs=pl.BlockSpec((tile_b, 1), lambda i: (i, 0)),     # per-row loss
        compiler_params=pltpu.CompilerParams(
            dimension_semantics=("parallel",)),                    # both TCs on v7x
    )(margin_arr, output1, output2, lab)

    # Tiny final reduction in the wrapper (divide by the *global* B).
    return jnp.sum(per_row) / B


def _reference_loss(output1, output2, label, margin=2.0):
    # Pure-JAX reference mirroring the PyTorch semantics.
    diff = output1.astype(jnp.float32) - output2.astype(jnp.float32) + _EPS
    d = jnp.sqrt(jnp.sum(diff * diff, axis=-1))
    lab = jnp.reshape(label, (-1,)).astype(jnp.float32)
    return jnp.mean(lab * d * d + (1.0 - lab) * jnp.maximum(margin - d, 0.0) ** 2)


if __name__ == "__main__":
    key = jax.random.PRNGKey(0)
    k1, k2, k3 = jax.random.split(key, 3)

    # Small embedding batch (D < 128, single full-extent tile).
    B, D = 8, 32
    output1 = jax.random.normal(k1, (B, D), dtype=jnp.float32)
    output2 = jax.random.normal(k2, (B, D), dtype=jnp.float32)
    label = jax.random.bernoulli(k3, 0.5, (B,)).astype(jnp.float32)

    loss = jax.block_until_ready(contrastive_loss(output1, output2, label, margin=2.0))
    ref = _reference_loss(output1, output2, label, margin=2.0)
    assert jnp.allclose(loss, ref, rtol=1e-5, atol=1e-5), (loss, ref)

    # Non-multiple-of-128 D with B not a multiple of 8 (full-extent block, no padding).
    k4, k5, k6 = jax.random.split(jax.random.PRNGKey(1), 3)
    B2, D2 = 20, 200
    o1b = jax.random.normal(k4, (B2, D2), dtype=jnp.float32)
    o2b = jax.random.normal(k5, (B2, D2), dtype=jnp.float32)
    labb = jax.random.bernoulli(k6, 0.5, (B2,)).astype(jnp.float32)
    loss2 = jax.block_until_ready(contrastive_loss(o1b, o2b, labb, margin=1.5))
    ref2 = _reference_loss(o1b, o2b, labb, margin=1.5)
    assert jnp.allclose(loss2, ref2, rtol=1e-5, atol=1e-5), (loss2, ref2)

    # Multi-tile pipeline with a ragged last tile (row masking path), bf16 inputs.
    k7, k8, k9 = jax.random.split(jax.random.PRNGKey(2), 3)
    B3, D3 = 200, 64
    o1c = jax.random.normal(k7, (B3, D3), dtype=jnp.bfloat16)
    o2c = jax.random.normal(k8, (B3, D3), dtype=jnp.bfloat16)
    labc = jax.random.bernoulli(k9, 0.5, (B3,)).astype(jnp.float32)
    loss3 = jax.block_until_ready(
        contrastive_loss(o1c, o2c, labc, margin=2.0, max_tile_b=64))
    ref3 = _reference_loss(o1c, o2c, labc, margin=2.0)
    assert jnp.allclose(loss3, ref3, rtol=1e-3, atol=1e-3), (loss3, ref3)

    print("KERNEL_OK")
</pallas_src>

<mosaic_0001>
module attributes {stable_mosaic.version = 11 : i64} {
  func.func @_contrastive_kernel(%arg0: i32, %arg1: memref<1x1xf32, #tpu.memory_space<smem>>, %arg2: memref<8x32xf32, #tpu.memory_space<vmem>>, %arg3: memref<8x32xf32, #tpu.memory_space<vmem>>, %arg4: memref<8x1xf32, #tpu.memory_space<vmem>>, %arg5: memref<8x1xf32, #tpu.memory_space<vmem>>) attributes {dimension_semantics = [#tpu.dimension_semantics<parallel>], iteration_bounds = array<i64: 1>, scalar_prefetch = 0 : i64, scratch_operands = 0 : i64, tpu.core_type = #tpu.core_type<tc>, window_params = [{transform_indices = @transform_0, window_bounds = array<i64: 1, 1>}, {transform_indices = @transform_1, window_bounds = array<i64: 8, 32>}, {transform_indices = @transform_2, window_bounds = array<i64: 8, 32>}, {transform_indices = @transform_3, window_bounds = array<i64: 8, 1>}, {transform_indices = @transform_4, window_bounds = array<i64: 8, 1>}]} {
    %c0 = arith.constant 0 : index
    %c0_0 = arith.constant 0 : index
    %0 = memref.load %arg1[%c0, %c0_0] : memref<1x1xf32, #tpu.memory_space<smem>>
    %c0_1 = arith.constant 0 : index
    %c0_2 = arith.constant 0 : index
    %1 = vector.load %arg2[%c0_1, %c0_2] : memref<8x32xf32, #tpu.memory_space<vmem>>, vector<8x32xf32>
    %c0_3 = arith.constant 0 : index
    %c0_4 = arith.constant 0 : index
    %2 = vector.load %arg3[%c0_3, %c0_4] : memref<8x32xf32, #tpu.memory_space<vmem>>, vector<8x32xf32>
    %3 = arith.subf %1, %2 : vector<8x32xf32>
    %cst = arith.constant 9.99999997E-7 : f32
    %4 = vector.broadcast %cst : f32 to vector<8x32xf32>
    %5 = arith.addf %3, %4 : vector<8x32xf32>
    %6 = arith.mulf %5, %5 : vector<8x32xf32>
    %cst_5 = arith.constant dense<0.000000e+00> : vector<8xf32>
    %7 = vector.multi_reduction <add>, %6, %cst_5 [1] : vector<8x32xf32> to vector<8xf32>
    %8 = vector.shape_cast %7 : vector<8xf32> to vector<8x1xf32>
    %9 = math.sqrt %8 : vector<8x1xf32>
    %c0_6 = arith.constant 0 : index
    %c0_7 = arith.constant 0 : index
    %10 = vector.load %arg4[%c0_6, %c0_7] : memref<8x1xf32, #tpu.memory_space<vmem>>, vector<8x1xf32>
    %11 = vector.broadcast %0 : f32 to vector<8x1xf32>
    %12 = arith.subf %11, %9 : vector<8x1xf32>
    %cst_8 = arith.constant 0.000000e+00 : f32
    %13 = vector.broadcast %cst_8 : f32 to vector<8x1xf32>
    %14 = arith.maximumf %12, %13 : vector<8x1xf32>
    %15 = arith.mulf %10, %8 : vector<8x1xf32>
    %cst_9 = arith.constant 1.000000e+00 : f32
    %16 = vector.broadcast %cst_9 : f32 to vector<8x1xf32>
    %17 = arith.subf %16, %10 : vector<8x1xf32>
    %18 = arith.mulf %17, %14 : vector<8x1xf32>
    %19 = arith.mulf %18, %14 : vector<8x1xf32>
    %20 = arith.addf %15, %19 : vector<8x1xf32>
    %c0_10 = arith.constant 0 : index
    %c0_11 = arith.constant 0 : index
    %21 = vector.load %arg5[%c0_10, %c0_11] : memref<8x1xf32, #tpu.memory_space<vmem>>, vector<8x1xf32>
    tpu.vector_store %arg5[%c0_10, %c0_11], %20 {strides = array<i32>} : memref<8x1xf32, #tpu.memory_space<vmem>>, vector<8x1xf32>,
    return
  }
  func.func @transform_0(%arg0: i32) -> (i32, i32) {
    %c0_i32 = arith.constant 0 : i32
    %c0_i32_0 = arith.constant 0 : i32
    %c0_i32_1 = arith.constant 0 : i32
    return %c0_i32, %c0_i32_0 : i32, i32
  }
  func.func @transform_1(%arg0: i32) -> (i32, i32) {
    %c0_i32 = arith.constant 0 : i32
    %c0_i32_0 = arith.constant 0 : i32
    return %arg0, %c0_i32 : i32, i32
  }
  func.func @transform_2(%arg0: i32) -> (i32, i32) {
    %c0_i32 = arith.constant 0 : i32
    %c0_i32_0 = arith.constant 0 : i32
    return %arg0, %c0_i32 : i32, i32
  }
  func.func @transform_3(%arg0: i32) -> (i32, i32) {
    %c0_i32 = arith.constant 0 : i32
    %c0_i32_0 = arith.constant 0 : i32
    return %arg0, %c0_i32 : i32, i32
  }
  func.func @transform_4(%arg0: i32) -> (i32, i32) {
    %c0_i32 = arith.constant 0 : i32
    %c0_i32_0 = arith.constant 0 : i32
    return %arg0, %c0_i32 : i32, i32
  }
}

</mosaic_0001>

<llo_original>
// kernel: tpu_custom_call.1
$region0: #{tpu_custom_call.1}
  #allocation0 [shape = 'u32[]', space=smem, size = 0x4, offset = 0x4, fixed_abs, tag = 'smem constant byte address 0x4 - core index']
  #allocation1 [shape = 'u32[144,128]{1,0:T(1,128)}', space=vmem, size = 0x12000, scoped, tag = 'internal scratch']
  #allocation2 [shape = 'f32[1,1]{1,0:T(1,128)S(6)}', space=smem, size = 0x200, scoped, tag = 'scoped memory for tpu_custom_call.1']
  %s0 = inlined_call_operand.<no memory space> [shape: f32[1,1], index: 0, kind: input, shape index: {}]
  %s1 = inlined_call_operand.vmem [shape: f32[8,32], index: 1, kind: input, shape index: {}]
  %s2 = inlined_call_operand.vmem [shape: f32[8,32], index: 2, kind: input, shape index: {}]
  %s3 = inlined_call_operand.vmem [shape: f32[8,1], index: 3, kind: input, shape index: {}]
  %s4 = inlined_call_operand.vmem [shape: f32[8,1], index: 4, kind: output, shape index: {}]
  %s5 = sld [smem:[#allocation0]]
  $region26: #{tpu_custom_call.1} parent=0
    _
  %s7 = ssub.s32 1, %s5
  %s8 = scalar_select 0, %s7, %s5
  %9 = sst [smem:[#allocation2]] %s0
  // Predicated region
  $region2: #{tpu_custom_call.1} parent=0 // pred_check
    _
  $region3: #{tpu_custom_call.1} parent=0 // pred_check_branch
    %11 = sbr.rel (0) target = $region5
  $region4: #{tpu_custom_call.1} parent=0 // pred_region
    _
  $region5: #{tpu_custom_call.1} parent=0 // pred_fallthru
    _
  // Predicated region
  $region6: #{tpu_custom_call.1} parent=0 // pred_check
    _
  $region7: #{tpu_custom_call.1} parent=0 // pred_check_branch
    %13 = sbr.rel (0) target = $region9
  $region8: #{tpu_custom_call.1} parent=0 // pred_region
    _
  $region9: #{tpu_custom_call.1} parent=0 // pred_fallthru
    _
  // Predicated region
  $region10: #{tpu_custom_call.1} parent=0 // pred_check
    _
  $region11: #{tpu_custom_call.1} parent=0 // pred_check_branch
    %15 = sbr.rel (0) target = $region13
  $region12: #{tpu_custom_call.1} parent=0 // pred_region
    _
  $region13: #{tpu_custom_call.1} parent=0 // pred_fallthru
    _
  // Predicated region
  $region14: #{tpu_custom_call.1} parent=0 // pred_check
    _
  $region15: #{tpu_custom_call.1} parent=0 // pred_check_branch
    %17 = sbr.rel (0) target = $region17
  $region16: #{tpu_custom_call.1} parent=0 // pred_region
    _
  $region17: #{tpu_custom_call.1} parent=0 // pred_fallthru
    _
  %s18 = sld [smem:[#allocation2]]
  %v19 = vld [vmem:[%s1] sm:$0xff]
  %v20 = vld [vmem:[%s2] sm:$0xff]
  %v21 = vsub.f32 %v19, %v20
  %v22 = vadd.f32 %v21, 1e-06
  %v23 = vmul.f32 %v22, %v22
  %vm24 = vcmask 261120
  %v25 = vsel %vm24, %v23, 0.0
  %26 = vadd.xlane.f32.xlu0 %v25
  %v27 = vpop.xlane.xlu0 %26
  %v28 = vrsqrt.pop %v27
  %v29 = vmul.f32 %v27, %v28
  %vm30 = vcmp.eq.f32.partialorder %v27, inf
  %v31 = vsel %vm30, %v27, %v29
  %vm32 = vcmp.eq.f32.partialorder %v27, 0.0
  %v33 = vand.u32 %v27, 2147483648
  %v34 = vsel %vm32, %v33, %v31
  %v35 = vld [vmem:[%s3] sm:$0xff]
  %v36 = vstv %s18
  %v37 = vsub.f32 %v36, %v34
  %v38 = vmax.f32 %v37, 0.0
  %v39 = vmul.f32 %v35, %v27
  %v40 = vsub.f32 1.0, %v35
  %v41 = vmul.f32 %v40, %v38
  %v42 = vmul.f32 %v41, %v38
  %v43 = vadd.f32 %v39, %v42
  %vm44 = vcmask 7168
  %45 = vst.msk [vmem:[%s4] sm:$0xff] %vm44, %v43
  // Predicated region
  $region18: #{tpu_custom_call.1} parent=0 // pred_check
    _
  $region19: #{tpu_custom_call.1} parent=0 // pred_check_branch
    %47 = sbr.rel (0) target = $region21
  $region20: #{tpu_custom_call.1} parent=0 // pred_region
    _
  $region21: #{tpu_custom_call.1} parent=0 // pred_fallthru
    _
  // Predicated region
  $region22: #{tpu_custom_call.1} parent=0 // pred_check
    _
  $region23: #{tpu_custom_call.1} parent=0 // pred_check_branch
    %49 = sbr.rel (0) target = $region25
  $region24: #{tpu_custom_call.1} parent=0 // pred_region
    _
  $region25: #{tpu_custom_call.1} parent=0 // pred_fallthru
    _

</llo_original>
